<compile_context>
chip_gen: v5e
topology: v5e:2x2
jax: 0.10.0
libtpu: 0.0.40
codegen_flags: <defaults>
</compile_context>

<pallas_src>
import jax
import jax.numpy as jnp
from jax.experimental import pallas as pl
from jax.experimental.pallas import tpu as pltpu


# ------------------------------ Pallas kernel --------------------------------
def _layer_scale_kernel(x_ref, w_ref, o_ref):
    # x_ref: (B, C, HW) f32 in VMEM; w_ref: (1, C, 1) f32 in VMEM.
    # Broadcast the per-channel scale over batch (dim 0) and spatial lanes (dim 2).
    o_ref[...] = x_ref[...] * w_ref[...]


# --------------------------------- wrapper -----------------------------------
def layer_scale(x, weight):
    """LayerScale.forward: x * weight.view(-1, 1, 1).

    x:      (B, C, H, W) float32
    weight: (C,)         float32
    returns (B, C, H, W) float32
    """
    B, C, H, W = x.shape
    assert weight.shape == (C,), (weight.shape, C)
    hw = H * W

    # Contiguous NCHW -> (B, C, H*W) is a metadata-only reshape (no HBM copy).
    # When H*W is a multiple of 128 the stores are lane-dense; otherwise the
    # block still equals the full array dims, so it remains correct (masked vst).
    x2 = x.reshape(B, C, hw)
    w2 = weight.reshape(1, C, 1)

    out = pl.pallas_call(
        _layer_scale_kernel,
        out_shape=jax.ShapeDtypeStruct((B, C, hw), x.dtype),
        grid_spec=pltpu.PrefetchScalarGridSpec(
            num_scalar_prefetch=0,
            grid=(1,),  # single step: whole tensor resident in VMEM
            in_specs=[
                pl.BlockSpec((B, C, hw), lambda i: (0, 0, 0)),
                pl.BlockSpec((1, C, 1), lambda i: (0, 0, 0)),
            ],
            out_specs=pl.BlockSpec((B, C, hw), lambda i: (0, 0, 0)),
        ),
        compiler_params=pltpu.CompilerParams(
            dimension_semantics=("arbitrary",)),
    )(x2, w2)
    return out.reshape(B, C, H, W)


# ----------------------------- pure-JAX reference ----------------------------
def reference_layer_scale(x, weight):
    return x * weight[None, :, None, None]


# ----------------------------------- main -------------------------------------
if __name__ == "__main__":
    B, C, H, W = 2, 64, 16, 16          # dim = 64 (LayerScale channel count)
    INIT_VALUES = 1e-5                  # nn.Parameter init: ones(dim) * 1e-5

    key = jax.random.PRNGKey(0)
    kx, kw = jax.random.split(key)
    x = jax.random.normal(kx, (B, C, H, W), jnp.float32)
    # Module initializes weight = ones * init_values; perturb it so the
    # correctness check is non-trivial (forward must hold for any weight).
    weight = jnp.full((C,), INIT_VALUES, jnp.float32) \
        + 0.1 * jax.random.normal(kw, (C,), jnp.float32)

    out = jax.jit(layer_scale)(x, weight)
    out = jax.block_until_ready(out)

    ref = reference_layer_scale(x, weight)
    assert out.shape == (B, C, H, W), out.shape
    max_err = float(jnp.max(jnp.abs(out - ref)))
    assert max_err < 1e-6, f"kernel/reference mismatch: max abs err {max_err}"

    print("KERNEL_OK")
</pallas_src>

<mosaic_0001>
module attributes {stable_mosaic.version = 11 : i64} {
  func.func @_layer_scale_kernel(%arg0: i32, %arg1: memref<2x64x256xf32, #tpu.memory_space<vmem>>, %arg2: memref<1x64x1xf32, #tpu.memory_space<vmem>>, %arg3: memref<2x64x256xf32, #tpu.memory_space<vmem>>) attributes {dimension_semantics = [#tpu.dimension_semantics<arbitrary>], iteration_bounds = array<i64: 1>, scalar_prefetch = 0 : i64, scratch_operands = 0 : i64, tpu.core_type = #tpu.core_type<tc>, window_params = [{pipeline_mode = #tpu.pipeline_mode<synchronous>, transform_indices = @transform_0, window_bounds = array<i64: 2, 64, 256>}, {pipeline_mode = #tpu.pipeline_mode<synchronous>, transform_indices = @transform_1, window_bounds = array<i64: 1, 64, 1>}, {pipeline_mode = #tpu.pipeline_mode<synchronous>, transform_indices = @transform_2, window_bounds = array<i64: 2, 64, 256>}]} {
    %c0 = arith.constant 0 : index
    %c0_0 = arith.constant 0 : index
    %c0_1 = arith.constant 0 : index
    %0 = vector.load %arg1[%c0, %c0_0, %c0_1] : memref<2x64x256xf32, #tpu.memory_space<vmem>>, vector<2x64x256xf32>
    %c0_2 = arith.constant 0 : index
    %c0_3 = arith.constant 0 : index
    %c0_4 = arith.constant 0 : index
    %1 = vector.load %arg2[%c0_2, %c0_3, %c0_4] : memref<1x64x1xf32, #tpu.memory_space<vmem>>, vector<1x64x1xf32>
    %2 = vector.broadcast %1 : vector<1x64x1xf32> to vector<2x64x256xf32>
    %3 = arith.mulf %0, %2 : vector<2x64x256xf32>
    %c0_5 = arith.constant 0 : index
    %c0_6 = arith.constant 0 : index
    %c0_7 = arith.constant 0 : index
    %4 = vector.load %arg3[%c0_5, %c0_6, %c0_7] : memref<2x64x256xf32, #tpu.memory_space<vmem>>, vector<2x64x256xf32>
    tpu.vector_store %arg3[%c0_5, %c0_6, %c0_7], %3 {strides = array<i32>} : memref<2x64x256xf32, #tpu.memory_space<vmem>>, vector<2x64x256xf32>,
    return
  }
  func.func @transform_0(%arg0: i32) -> (i32, i32, i32) {
    %c0_i32 = arith.constant 0 : i32
    %c0_i32_0 = arith.constant 0 : i32
    %c0_i32_1 = arith.constant 0 : i32
    %c0_i32_2 = arith.constant 0 : i32
    return %c0_i32, %c0_i32_0, %c0_i32_1 : i32, i32, i32
  }
  func.func @transform_1(%arg0: i32) -> (i32, i32, i32) {
    %c0_i32 = arith.constant 0 : i32
    %c0_i32_0 = arith.constant 0 : i32
    %c0_i32_1 = arith.constant 0 : i32
    %c0_i32_2 = arith.constant 0 : i32
    return %c0_i32, %c0_i32_0, %c0_i32_1 : i32, i32, i32
  }
  func.func @transform_2(%arg0: i32) -> (i32, i32, i32) {
    %c0_i32 = arith.constant 0 : i32
    %c0_i32_0 = arith.constant 0 : i32
    %c0_i32_1 = arith.constant 0 : i32
    %c0_i32_2 = arith.constant 0 : i32
    return %c0_i32, %c0_i32_0, %c0_i32_1 : i32, i32, i32
  }
}

</mosaic_0001>

<llo_original>
// kernel: layer_scale.1
$region0: #{layer_scale.1}
  #allocation0 [shape = 'u32[]', space=smem, size = 0x4, offset = 0x4, fixed_abs, tag = 'smem constant byte address 0x4 - core index']
  #allocation1 [shape = 'u32[72,128]{1,0:T(1,128)}', space=vmem, size = 0x9000, scoped, tag = 'internal scratch']
  %s0 = inlined_call_operand.vmem [shape: f32[2,64,256], index: 0, kind: input, shape index: {}]
  %s1 = inlined_call_operand.vmem [shape: f32[1,64,1], index: 1, kind: input, shape index: {}]
  %s2 = inlined_call_operand.vmem [shape: f32[2,64,256], index: 2, kind: output, shape index: {}]
  %s3 = sld [smem:[#allocation0]]
  $region18: #{layer_scale.1} parent=0
    _
  %s5 = ssub.s32 1, %s3
  %s6 = scalar_select 0, %s5, %s3
  // Predicated region
  $region2: #{layer_scale.1} parent=0 // pred_check
    _
  $region3: #{layer_scale.1} parent=0 // pred_check_branch
    %8 = sbr.rel (0) target = $region5
  $region4: #{layer_scale.1} parent=0 // pred_region
    _
  $region5: #{layer_scale.1} parent=0 // pred_fallthru
    _
  // Predicated region
  $region6: #{layer_scale.1} parent=0 // pred_check
    _
  $region7: #{layer_scale.1} parent=0 // pred_check_branch
    %10 = sbr.rel (0) target = $region9
  $region8: #{layer_scale.1} parent=0 // pred_region
    _
  $region9: #{layer_scale.1} parent=0 // pred_fallthru
    _
  %v11 = vld [vmem:[%s0] sm:$0xff]
  %v12 = vld [vmem:[%s0 + $0x8] sm:$0xff]
  %v13 = vld [vmem:[%s0 + $0x10] sm:$0xff]
  %v14 = vld [vmem:[%s0 + $0x18] sm:$0xff]
  %v15 = vld [vmem:[%s0 + $0x20] sm:$0xff]
  %v16 = vld [vmem:[%s0 + $0x28] sm:$0xff]
  %v17 = vld [vmem:[%s0 + $0x30] sm:$0xff]
  %v18 = vld [vmem:[%s0 + $0x38] sm:$0xff]
  %v19 = vld [vmem:[%s0 + $0x40] sm:$0xff]
  %v20 = vld [vmem:[%s0 + $0x48] sm:$0xff]
  %v21 = vld [vmem:[%s0 + $0x50] sm:$0xff]
  %v22 = vld [vmem:[%s0 + $0x58] sm:$0xff]
  %v23 = vld [vmem:[%s0 + $0x60] sm:$0xff]
  %v24 = vld [vmem:[%s0 + $0x68] sm:$0xff]
  %v25 = vld [vmem:[%s0 + $0x70] sm:$0xff]
  %v26 = vld [vmem:[%s0 + $0x78] sm:$0xff]
  %v27 = vld [vmem:[%s0 + $0x80] sm:$0xff]
  %v28 = vld [vmem:[%s0 + $0x88] sm:$0xff]
  %v29 = vld [vmem:[%s0 + $0x90] sm:$0xff]
  %v30 = vld [vmem:[%s0 + $0x98] sm:$0xff]
  %v31 = vld [vmem:[%s0 + $0xa0] sm:$0xff]
  %v32 = vld [vmem:[%s0 + $0xa8] sm:$0xff]
  %v33 = vld [vmem:[%s0 + $0xb0] sm:$0xff]
  %v34 = vld [vmem:[%s0 + $0xb8] sm:$0xff]
  %v35 = vld [vmem:[%s0 + $0xc0] sm:$0xff]
  %v36 = vld [vmem:[%s0 + $0xc8] sm:$0xff]
  %v37 = vld [vmem:[%s0 + $0xd0] sm:$0xff]
  %v38 = vld [vmem:[%s0 + $0xd8] sm:$0xff]
  %v39 = vld [vmem:[%s0 + $0xe0] sm:$0xff]
  %v40 = vld [vmem:[%s0 + $0xe8] sm:$0xff]
  %v41 = vld [vmem:[%s0 + $0xf0] sm:$0xff]
  %v42 = vld [vmem:[%s0 + $0xf8] sm:$0xff]
  %v43 = vld [vmem:[%s1] sm:$0xff]
  %v44 = vld [vmem:[%s1 + $0x8] sm:$0xff]
  %v45 = vld [vmem:[%s1 + $0x10] sm:$0xff]
  %v46 = vld [vmem:[%s1 + $0x18] sm:$0xff]
  %v47 = vld [vmem:[%s1 + $0x20] sm:$0xff]
  %v48 = vld [vmem:[%s1 + $0x28] sm:$0xff]
  %v49 = vld [vmem:[%s1 + $0x30] sm:$0xff]
  %v50 = vld [vmem:[%s1 + $0x38] sm:$0xff]
  %52 = vset.pattern.permute.xlu0 0
  %53 = vperm.xlu0 %52, %v43
  %v54 = vpop.permute.xlu0 %53
  %57 = vset.pattern.permute.xlu0 0
  %58 = vperm.xlu0 %57, %v44
  %v59 = vpop.permute.xlu0 %58
  %62 = vset.pattern.permute.xlu0 0
  %63 = vperm.xlu0 %62, %v45
  %v64 = vpop.permute.xlu0 %63
  %67 = vset.pattern.permute.xlu0 0
  %68 = vperm.xlu0 %67, %v46
  %v69 = vpop.permute.xlu0 %68
  %72 = vset.pattern.permute.xlu0 0
  %73 = vperm.xlu0 %72, %v47
  %v74 = vpop.permute.xlu0 %73
  %77 = vset.pattern.permute.xlu0 0
  %78 = vperm.xlu0 %77, %v48
  %v79 = vpop.permute.xlu0 %78
  %82 = vset.pattern.permute.xlu0 0
  %83 = vperm.xlu0 %82, %v49
  %v84 = vpop.permute.xlu0 %83
  %87 = vset.pattern.permute.xlu0 0
  %88 = vperm.xlu0 %87, %v50
  %v89 = vpop.permute.xlu0 %88
  %v91 = vmul.f32 %v11, %v54
  %v92 = vmul.f32 %v12, %v54
  %v93 = vmul.f32 %v13, %v59
  %v94 = vmul.f32 %v14, %v59
  %v95 = vmul.f32 %v15, %v64
  %v96 = vmul.f32 %v16, %v64
  %v97 = vmul.f32 %v17, %v69
  %v98 = vmul.f32 %v18, %v69
  %v99 = vmul.f32 %v19, %v74
  %v100 = vmul.f32 %v20, %v74
  %v101 = vmul.f32 %v21, %v79
  %v102 = vmul.f32 %v22, %v79
  %v103 = vmul.f32 %v23, %v84
  %v104 = vmul.f32 %v24, %v84
  %v105 = vmul.f32 %v25, %v89
  %v106 = vmul.f32 %v26, %v89
  %v107 = vmul.f32 %v27, %v54
  %v108 = vmul.f32 %v28, %v54
  %v109 = vmul.f32 %v29, %v59
  %v110 = vmul.f32 %v30, %v59
  %v111 = vmul.f32 %v31, %v64
  %v112 = vmul.f32 %v32, %v64
  %v113 = vmul.f32 %v33, %v69
  %v114 = vmul.f32 %v34, %v69
  %v115 = vmul.f32 %v35, %v74
  %v116 = vmul.f32 %v36, %v74
  %v117 = vmul.f32 %v37, %v79
  %v118 = vmul.f32 %v38, %v79
  %v119 = vmul.f32 %v39, %v84
  %v120 = vmul.f32 %v40, %v84
  %v121 = vmul.f32 %v41, %v89
  %v122 = vmul.f32 %v42, %v89
  %123 = vst [vmem:[%s2] sm:$0xff] %v91
  %124 = vst [vmem:[%s2 + $0x8] sm:$0xff] %v92
  %125 = vst [vmem:[%s2 + $0x10] sm:$0xff] %v93
  %126 = vst [vmem:[%s2 + $0x18] sm:$0xff] %v94
  %127 = vst [vmem:[%s2 + $0x20] sm:$0xff] %v95
  %128 = vst [vmem:[%s2 + $0x28] sm:$0xff] %v96
  %129 = vst [vmem:[%s2 + $0x30] sm:$0xff] %v97
  %130 = vst [vmem:[%s2 + $0x38] sm:$0xff] %v98
  %131 = vst [vmem:[%s2 + $0x40] sm:$0xff] %v99
  %132 = vst [vmem:[%s2 + $0x48] sm:$0xff] %v100
  %133 = vst [vmem:[%s2 + $0x50] sm:$0xff] %v101
  %134 = vst [vmem:[%s2 + $0x58] sm:$0xff] %v102
  %135 = vst [vmem:[%s2 + $0x60] sm:$0xff] %v103
  %136 = vst [vmem:[%s2 + $0x68] sm:$0xff] %v104
  %137 = vst [vmem:[%s2 + $0x70] sm:$0xff] %v105
  %138 = vst [vmem:[%s2 + $0x78] sm:$0xff] %v106
  %139 = vst [vmem:[%s2 + $0x80] sm:$0xff] %v107
  %140 = vst [vmem:[%s2 + $0x88] sm:$0xff] %v108
  %141 = vst [vmem:[%s2 + $0x90] sm:$0xff] %v109
  %142 = vst [vmem:[%s2 + $0x98] sm:$0xff] %v110
  %143 = vst [vmem:[%s2 + $0xa0] sm:$0xff] %v111
  %144 = vst [vmem:[%s2 + $0xa8] sm:$0xff] %v112
  %145 = vst [vmem:[%s2 + $0xb0] sm:$0xff] %v113
  %146 = vst [vmem:[%s2 + $0xb8] sm:$0xff] %v114
  %147 = vst [vmem:[%s2 + $0xc0] sm:$0xff] %v115
  %148 = vst [vmem:[%s2 + $0xc8] sm:$0xff] %v116
  %149 = vst [vmem:[%s2 + $0xd0] sm:$0xff] %v117
  %150 = vst [vmem:[%s2 + $0xd8] sm:$0xff] %v118
  %151 = vst [vmem:[%s2 + $0xe0] sm:$0xff] %v119
  %152 = vst [vmem:[%s2 + $0xe8] sm:$0xff] %v120
  %153 = vst [vmem:[%s2 + $0xf0] sm:$0xff] %v121
  %154 = vst [vmem:[%s2 + $0xf8] sm:$0xff] %v122
  // Predicated region
  $region10: #{layer_scale.1} parent=0 // pred_check
    _
  $region11: #{layer_scale.1} parent=0 // pred_check_branch
    %156 = sbr.rel (0) target = $region13
  $region12: #{layer_scale.1} parent=0 // pred_region
    _
  $region13: #{layer_scale.1} parent=0 // pred_fallthru
    _
  // Predicated region
  $region14: #{layer_scale.1} parent=0 // pred_check
    _
  $region15: #{layer_scale.1} parent=0 // pred_check_branch
    %158 = sbr.rel (0) target = $region17
  $region16: #{layer_scale.1} parent=0 // pred_region
    _
  $region17: #{layer_scale.1} parent=0 // pred_fallthru
    _

</llo_original>
